<compile_context>
chip_gen: v7x
topology: tpu7x:2x2x1
jax: 0.10.0
libtpu: 0.0.40
codegen_flags: <defaults>
</compile_context>

<pallas_src>
import jax
import jax.numpy as jnp
from jax.experimental import pallas as pl
from jax.experimental.pallas import tpu as pltpu


def _linear_kernel(w_ref, x_ref, o_ref):
    # w_ref: (OUT, IN) f32, VMEM-resident (constant index_map across the grid)
    # x_ref: (TM, IN)  f32, streamed/double-buffered tile of x
    # o_ref: (TM, OUT) f32, natural-layout output tile
    o_ref[...] = jax.lax.dot_general(
        x_ref[...],
        w_ref[...],
        dimension_numbers=(((1,), (1,)), ((), ())),  # contract IN with IN
        preferred_element_type=jnp.float32,
    ).astype(o_ref.dtype)


def _round_up(n, m):
    return ((n + m - 1) // m) * m


# TM=8192: (8192,32) f32 x-tile lane-pads to 4 MiB, (8192,2) out-tile to 4 MiB;
# double-buffered total ~16 MiB -> fits every generation's scoped VMEM.
_TM_CAP = 8192
_SMALL_B_THRESHOLD = 1024  # below this, plain XLA dot beats the kernel launch


def linear_pallas(x, weight, *, tm_cap=_TM_CAP, use_pallas=None):
    """y = x @ weight.T  (PyTorch nn.Linear(32, 2, bias=False) forward).

    x:      (..., IN)  float32
    weight: (OUT, IN)  float32 (PyTorch layout)
    returns (..., OUT) float32
    """
    OUT, IN = weight.shape
    assert x.shape[-1] == IN
    lead_shape = x.shape[:-1]
    x2 = x.reshape(-1, IN)
    B = x2.shape[0]

    if use_pallas is None:
        use_pallas = B >= _SMALL_B_THRESHOLD
    if not use_pallas:
        return (x2 @ weight.T).reshape(*lead_shape, OUT)

    assert tm_cap % 128 == 0
    TM = min(tm_cap, _round_up(B, 128))
    grid = (pl.cdiv(B, TM),)
    itemsize = jnp.dtype(x2.dtype).itemsize

    y = pl.pallas_call(
        _linear_kernel,
        out_shape=jax.ShapeDtypeStruct((B, OUT), x2.dtype),
        grid_spec=pltpu.PrefetchScalarGridSpec(
            num_scalar_prefetch=0,
            grid=grid,
            in_specs=[
                # Constant index_map -> weight stays resident in VMEM.
                pl.BlockSpec((OUT, IN), lambda i: (0, 0)),
                # Batch-tiled x: double-buffered streaming from HBM.
                # Last block may be ragged; Pallas masks the OOB writeback.
                pl.BlockSpec((TM, IN), lambda i: (i, 0)),
            ],
            out_specs=pl.BlockSpec((TM, OUT), lambda i: (i, 0)),
        ),
        compiler_params=pltpu.CompilerParams(
            # Batch tiles are independent -> shard across TCs on megacore parts.
            dimension_semantics=("parallel",),
            # ~16 MiB actual footprint; 32 MiB leaves headroom and is within
            # every generation's physical VMEM.
            vmem_limit_bytes=32 * 1024 * 1024,
        ),
        cost_estimate=pl.CostEstimate(
            flops=2 * B * IN * OUT,
            transcendentals=0,
            bytes_accessed=(B * IN + OUT * IN + B * OUT) * itemsize,
        ),
    )(weight, x2)

    return y.reshape(*lead_shape, OUT)


if __name__ == "__main__":
    key = jax.random.PRNGKey(0)
    k_x, k_w, k_x2 = jax.random.split(key, 3)

    IN, OUT = 32, 2

    # Deterministic init mimicking PyTorch's uniform(-1/sqrt(in), 1/sqrt(in)),
    # stored in PyTorch layout (out_features, in_features).
    bound = 1.0 / (IN ** 0.5)
    weight = jax.random.uniform(
        k_w, (OUT, IN), dtype=jnp.float32, minval=-bound, maxval=bound
    )

    # Small shape consistent with the module (batch=8, hidden=32); force the
    # Pallas path so the kernel itself is exercised.
    x_small = jax.random.normal(k_x, (8, IN), dtype=jnp.float32)
    y_small = jax.block_until_ready(linear_pallas(x_small, weight, use_pallas=True))
    assert y_small.shape == (8, OUT)
    assert jnp.allclose(y_small, x_small @ weight.T, atol=1e-5, rtol=1e-5)

    # Ragged batch (not a multiple of 128 / TM) to exercise the no-pad
    # cdiv-grid path with a masked final block.
    x_rag = jax.random.normal(k_x2, (1000, IN), dtype=jnp.float32)
    y_rag = jax.block_until_ready(linear_pallas(x_rag, weight, use_pallas=True))
    assert y_rag.shape == (1000, OUT)
    assert jnp.allclose(y_rag, x_rag @ weight.T, atol=1e-5, rtol=1e-5)

    print("KERNEL_OK")
</pallas_src>

<mosaic_0001>
module attributes {stable_mosaic.version = 11 : i64} {
  func.func @_linear_kernel(%arg0: i32, %arg1: memref<2x32xf32, #tpu.memory_space<vmem>>, %arg2: memref<128x32xf32, #tpu.memory_space<vmem>>, %arg3: memref<128x2xf32, #tpu.memory_space<vmem>>) attributes {dimension_semantics = [#tpu.dimension_semantics<parallel>], iteration_bounds = array<i64: 1>, scalar_prefetch = 0 : i64, scratch_operands = 0 : i64, tpu.core_type = #tpu.core_type<tc>, window_params = [{pipeline_mode = #tpu.pipeline_mode<synchronous>, transform_indices = @transform_0, window_bounds = array<i64: 2, 32>}, {transform_indices = @transform_1, window_bounds = array<i64: 128, 32>}, {transform_indices = @transform_2, window_bounds = array<i64: 128, 2>}]} {
    %c0 = arith.constant 0 : index
    %c0_0 = arith.constant 0 : index
    %0 = vector.load %arg2[%c0, %c0_0] : memref<128x32xf32, #tpu.memory_space<vmem>>, vector<128x32xf32>
    %c0_1 = arith.constant 0 : index
    %c0_2 = arith.constant 0 : index
    %1 = vector.load %arg1[%c0_1, %c0_2] : memref<2x32xf32, #tpu.memory_space<vmem>>, vector<2x32xf32>
    %cst = arith.constant dense<0.000000e+00> : vector<128x2xf32>
    %2 = tpu.matmul %0, %1, %cst {dimension_numbers = #tpu.dot_dimension_numbers<[1], [1], [0], [0], [0, 0, 1, 0], [], []>} : vector<128x32xf32>, vector<2x32xf32>, vector<128x2xf32> -> vector<128x2xf32>
    %c0_3 = arith.constant 0 : index
    %c0_4 = arith.constant 0 : index
    %3 = vector.load %arg3[%c0_3, %c0_4] : memref<128x2xf32, #tpu.memory_space<vmem>>, vector<128x2xf32>
    tpu.vector_store %arg3[%c0_3, %c0_4], %2 {strides = array<i32>} : memref<128x2xf32, #tpu.memory_space<vmem>>, vector<128x2xf32>,
    return
  }
  func.func @transform_0(%arg0: i32) -> (i32, i32) {
    %c0_i32 = arith.constant 0 : i32
    %c0_i32_0 = arith.constant 0 : i32
    %c0_i32_1 = arith.constant 0 : i32
    return %c0_i32, %c0_i32_0 : i32, i32
  }
  func.func @transform_1(%arg0: i32) -> (i32, i32) {
    %c0_i32 = arith.constant 0 : i32
    %c0_i32_0 = arith.constant 0 : i32
    return %arg0, %c0_i32 : i32, i32
  }
  func.func @transform_2(%arg0: i32) -> (i32, i32) {
    %c0_i32 = arith.constant 0 : i32
    %c0_i32_0 = arith.constant 0 : i32
    return %arg0, %c0_i32 : i32, i32
  }
}

</mosaic_0001>

<llo_original>
// kernel: tpu_custom_call.1
$region0: #{tpu_custom_call.1}
  #allocation0 [shape = 'u32[]', space=smem, size = 0x4, offset = 0x4, fixed_abs, tag = 'smem constant byte address 0x4 - core index']
  #allocation1 [shape = 'u32[144,128]{1,0:T(1,128)}', space=vmem, size = 0x12000, scoped, tag = 'internal scratch']
  %s0 = inlined_call_operand.hbm [shape: f32[2,32], index: 0, kind: input, shape index: {}]
  %s1 = inlined_call_operand.hbm [shape: f32[8,32], index: 1, kind: input, shape index: {}]
  %s2 = inlined_call_operand.vmem [shape: f32[8,2], index: 2, kind: output, shape index: {}]
  %s3 = sld [smem:[#allocation0]]
  $region60: #{tpu_custom_call.1} parent=0
    _
  %s5 = ssub.s32 1, %s3
  %s6 = scalar_select 0, %s5, %s3
  $region1: #{tpu_custom_call.1} parent=0
    #allocation2 [shape = 'u8[1024]{0}', space=vmem, size = 0x400, scoped, tag = 'input window, operand 0, single buffered']
    #allocation3 [shape = 's32[1]{0}', space=sflag, size = 0x4, scoped, tag = 'scoped memory for tpu_custom_call.1']
    #allocation4 [shape = 'u8[65536]{0}', space=vmem, size = 0x10000, scoped, tag = 'input window, operand 1, single buffered']
    #allocation5 [shape = 's32[1]{0}', space=sflag, size = 0x4, scoped, tag = 'scoped memory for tpu_custom_call.1']
    #allocation6 [shape = 'u8[65536]{0}', space=vmem, size = 0x10000, scoped, tag = 'output window, operand 0, single buffered']
    %7 = vsyncpa [#allocation3], 0
    %8 = vsyncpa [#allocation5], 0
    // Predicated region
    $region2: #{tpu_custom_call.1} parent=1 // pred_check
      _
    $region3: #{tpu_custom_call.1} parent=1 // pred_check_branch
      %10 = sbr.rel (0) target = $region5
    $region4: #{tpu_custom_call.1} parent=1 // pred_region
      %s12 = ssub.s32 32, 32
      %13 = vsyncadd [#allocation3], %s12
      %s15 = sshll.u32 [#allocation2], 4
      %s16 = int_to_ptr.vmem [resolvable:$true] %s15
      %18 = dma.hbm_to_vmem [thread:$0]  %s0, 32, %s16, [#allocation3]
    $region5: #{tpu_custom_call.1} parent=1 // pred_fallthru
      _
    // Predicated region
    $region6: #{tpu_custom_call.1} parent=1 // pred_check
      _
    $region7: #{tpu_custom_call.1} parent=1 // pred_check_branch
      %20 = sbr.rel (0) target = $region9
    $region8: #{tpu_custom_call.1} parent=1 // pred_region
      %s22 = ssub.s32 2048, 128
      %23 = vsyncadd [#allocation5], %s22
      %s24 = sshll.u32 [#allocation4], 4
      %s25 = int_to_ptr.vmem [resolvable:$true] %s24
      %30 = dma.hbm_to_vmem [thread:$0]  %s1, 128, %s25, [#allocation5], 128, 128, 8
    $region9: #{tpu_custom_call.1} parent=1 // pred_fallthru
      _
    // Predicated region
    $region10: #{tpu_custom_call.1} parent=1 // pred_check
      _
    $region11: #{tpu_custom_call.1} parent=1 // pred_check_branch
      %32 = sbr.rel (0) target = $region13
    $region12: #{tpu_custom_call.1} parent=1 // pred_region
      %33 = dma.done [#allocation3], 32
    $region13: #{tpu_custom_call.1} parent=1 // pred_fallthru
      _
    // Predicated region
    $region14: #{tpu_custom_call.1} parent=1 // pred_check
      _
    $region15: #{tpu_custom_call.1} parent=1 // pred_check_branch
      %35 = sbr.rel (0) target = $region17
    $region16: #{tpu_custom_call.1} parent=1 // pred_region
      %36 = dma.done [#allocation5], 2048
    $region17: #{tpu_custom_call.1} parent=1 // pred_fallthru
      _
    %v37 = vld [vmem:[#allocation4] sm:$0xff]
    %v38 = vld [vmem:[#allocation4 + $0x8] sm:$0xff]
    %v39 = vld [vmem:[#allocation4 + $0x10] sm:$0xff]
    %v40 = vld [vmem:[#allocation4 + $0x18] sm:$0xff]
    %v41 = vld [vmem:[#allocation4 + $0x20] sm:$0xff]
    %v42 = vld [vmem:[#allocation4 + $0x28] sm:$0xff]
    %v43 = vld [vmem:[#allocation4 + $0x30] sm:$0xff]
    %v44 = vld [vmem:[#allocation4 + $0x38] sm:$0xff]
    %v45 = vld [vmem:[#allocation4 + $0x40] sm:$0xff]
    %v46 = vld [vmem:[#allocation4 + $0x48] sm:$0xff]
    %v47 = vld [vmem:[#allocation4 + $0x50] sm:$0xff]
    %v48 = vld [vmem:[#allocation4 + $0x58] sm:$0xff]
    %v49 = vld [vmem:[#allocation4 + $0x60] sm:$0xff]
    %v50 = vld [vmem:[#allocation4 + $0x68] sm:$0xff]
    %v51 = vld [vmem:[#allocation4 + $0x70] sm:$0xff]
    %v52 = vld [vmem:[#allocation4 + $0x78] sm:$0xff]
    %v53 = vld [vmem:[#allocation2] sm:$0x3]
    %vm54 = vcmask 261120
    %v56 = vsel %vm54, %v37, 0
    %v59 = vsel %vm54, %v38, 0
    %v62 = vsel %vm54, %v39, 0
    %v65 = vsel %vm54, %v40, 0
    %v68 = vsel %vm54, %v41, 0
    %v71 = vsel %vm54, %v42, 0
    %v74 = vsel %vm54, %v43, 0
    %v77 = vsel %vm54, %v44, 0
    %v80 = vsel %vm54, %v45, 0
    %v83 = vsel %vm54, %v46, 0
    %v86 = vsel %vm54, %v47, 0
    %v89 = vsel %vm54, %v48, 0
    %v92 = vsel %vm54, %v49, 0
    %v95 = vsel %vm54, %v50, 0
    %v98 = vsel %vm54, %v51, 0
    %v101 = vsel %vm54, %v52, 0
    %v104 = vsel %vm54, %v53, 0
    %106 = vmatprep.subr.mxu0 0.0
    %107 = vmatpush1.xpose.msra.mxu0 %v104
    %108 = vmatprep.subr.mxu0 0.0
    %109 = vmatpush1.xpose.msra.mxu0 0.0
    %110 = vmatprep.subr.mxu0 0.0
    %111 = vmatpush1.xpose.msra.mxu0 0.0
    %112 = vmatprep.subr.mxu0 0.0
    %113 = vmatpush1.xpose.msra.mxu0 0.0
    %114 = vmatprep.subr.mxu0 0.0
    %115 = vmatpush1.xpose.msra.mxu0 0.0
    %116 = vmatprep.subr.mxu0 0.0
    %117 = vmatpush1.xpose.msra.mxu0 0.0
    %118 = vmatprep.subr.mxu0 0.0
    %119 = vmatpush1.xpose.msra.mxu0 0.0
    %120 = vmatprep.subr.mxu0 0.0
    %121 = vmatpush1.xpose.msra.mxu0 0.0
    %122 = vmatprep.subr.mxu0 0.0
    %123 = vmatpush1.xpose.msra.mxu0 0.0
    %124 = vmatprep.subr.mxu0 0.0
    %125 = vmatpush1.xpose.msra.mxu0 0.0
    %126 = vmatprep.subr.mxu0 0.0
    %127 = vmatpush1.xpose.msra.mxu0 0.0
    %128 = vmatprep.subr.mxu0 0.0
    %129 = vmatpush1.xpose.msra.mxu0 0.0
    %130 = vmatprep.subr.mxu0 0.0
    %131 = vmatpush1.xpose.msra.mxu0 0.0
    %132 = vmatprep.subr.mxu0 0.0
    %133 = vmatpush1.xpose.msra.mxu0 0.0
    %134 = vmatprep.subr.mxu0 0.0
    %135 = vmatpush1.xpose.msra.mxu0 0.0
    %136 = vmatprep.subr.mxu0 0.0
    %137 = vmatpush1.xpose.msra.mxu0 0.0
    %138 = vmatprep.subr.mxu0 0.0
    %139 = vmatpush1.xpose.msra.mxu0 0.0
    %140 = vmatprep.subr.mxu0 0.0
    %141 = vmatpush1.xpose.msra.mxu0 0.0
    %142 = vmatprep.subr.mxu0 0.0
    %143 = vmatpush1.xpose.msra.mxu0 0.0
    %144 = vmatprep.subr.mxu0 0.0
    %145 = vmatpush1.xpose.msra.mxu0 0.0
    %146 = vmatprep.subr.mxu0 0.0
    %147 = vmatpush1.xpose.msra.mxu0 0.0
    %148 = vmatprep.subr.mxu0 0.0
    %149 = vmatpush1.xpose.msra.mxu0 0.0
    %150 = vmatprep.subr.mxu0 0.0
    %151 = vmatpush1.xpose.msra.mxu0 0.0
    %152 = vmatprep.subr.mxu0 0.0
    %153 = vmatpush1.xpose.msra.mxu0 0.0
    %154 = vmatprep.subr.mxu0 0.0
    %155 = vmatpush1.xpose.msra.mxu0 0.0
    %156 = vmatprep.subr.mxu0 0.0
    %157 = vmatpush1.xpose.msra.mxu0 0.0
    %158 = vmatprep.subr.mxu0 0.0
    %159 = vmatpush1.xpose.msra.mxu0 0.0
    %160 = vmatprep.subr.mxu0 0.0
    %161 = vmatpush1.xpose.msra.mxu0 0.0
    %162 = vmatprep.subr.mxu0 0.0
    %163 = vmatpush1.xpose.msra.mxu0 0.0
    %164 = vmatprep.subr.mxu0 0.0
    %165 = vmatpush1.xpose.msra.mxu0 0.0
    %166 = vmatprep.subr.mxu0 0.0
    %167 = vmatpush1.xpose.msra.mxu0 0.0
    %168 = vmatprep.subr.mxu0 0.0
    %169 = vmatpush1.xpose.msra.mxu0 0.0
    %170 = vmatprep.mubr.f32.mxu0 0.0
    %171 = vmatmul.mubr.f32.gmra.mrb[0].mxu0 %v56
    %v172 = vpop.f32.mrb[0].mxu0
    %v173 = vadd.f32 0.0, %v172
    %v174 = vpop.f32.mrb[0].mxu0
    %175 = vmatprep.mubr.f32.mxu0 0.0
    %176 = vmatmul.mubr.f32.gmra.mrb[0].mxu0 %v59
    %v177 = vpop.f32.mrb[0].mxu0
    %v178 = vadd.f32 0.0, %v177
    %v179 = vpop.f32.mrb[0].mxu0
    %180 = vmatprep.mubr.f32.mxu0 0.0
    %181 = vmatmul.mubr.f32.gmra.mrb[0].mxu0 %v62
    %v182 = vpop.f32.mrb[0].mxu0
    %v183 = vadd.f32 0.0, %v182
    %v184 = vpop.f32.mrb[0].mxu0
    %185 = vmatprep.mubr.f32.mxu0 0.0
    %186 = vmatmul.mubr.f32.gmra.mrb[0].mxu0 %v65
    %v187 = vpop.f32.mrb[0].mxu0
    %v188 = vadd.f32 0.0, %v187
    %v189 = vpop.f32.mrb[0].mxu0
    %190 = vmatprep.mubr.f32.mxu0 0.0
    %191 = vmatmul.mubr.f32.gmra.mrb[0].mxu0 %v68
    %v192 = vpop.f32.mrb[0].mxu0
    %v193 = vadd.f32 0.0, %v192
    %v194 = vpop.f32.mrb[0].mxu0
    %195 = vmatprep.mubr.f32.mxu0 0.0
    %196 = vmatmul.mubr.f32.gmra.mrb[0].mxu0 %v71
    %v197 = vpop.f32.mrb[0].mxu0
    %v198 = vadd.f32 0.0, %v197
    %v199 = vpop.f32.mrb[0].mxu0
    %200 = vmatprep.mubr.f32.mxu0 0.0
    %201 = vmatmul.mubr.f32.gmra.mrb[0].mxu0 %v74
    %v202 = vpop.f32.mrb[0].mxu0
    %v203 = vadd.f32 0.0, %v202
    %v204 = vpop.f32.mrb[0].mxu0
    %205 = vmatprep.mubr.f32.mxu0 0.0
    %206 = vmatmul.mubr.f32.gmra.mrb[0].mxu0 %v77
    %v207 = vpop.f32.mrb[0].mxu0
    %v208 = vadd.f32 0.0, %v207
    %v209 = vpop.f32.mrb[0].mxu0
    %210 = vmatprep.mubr.f32.mxu0 0.0
    %211 = vmatmul.mubr.f32.gmra.mrb[0].mxu0 %v80
    %v212 = vpop.f32.mrb[0].mxu0
    %v213 = vadd.f32 0.0, %v212
    %v214 = vpop.f32.mrb[0].mxu0
    %215 = vmatprep.mubr.f32.mxu0 0.0
    %216 = vmatmul.mubr.f32.gmra.mrb[0].mxu0 %v83
    %v217 = vpop.f32.mrb[0].mxu0
    %v218 = vadd.f32 0.0, %v217
    %v219 = vpop.f32.mrb[0].mxu0
    %220 = vmatprep.mubr.f32.mxu0 0.0
    %221 = vmatmul.mubr.f32.gmra.mrb[0].mxu0 %v86
    %v222 = vpop.f32.mrb[0].mxu0
    %v223 = vadd.f32 0.0, %v222
    %v224 = vpop.f32.mrb[0].mxu0
    %225 = vmatprep.mubr.f32.mxu0 0.0
    %226 = vmatmul.mubr.f32.gmra.mrb[0].mxu0 %v89
    %v227 = vpop.f32.mrb[0].mxu0
    %v228 = vadd.f32 0.0, %v227
    %v229 = vpop.f32.mrb[0].mxu0
    %230 = vmatprep.mubr.f32.mxu0 0.0
    %231 = vmatmul.mubr.f32.gmra.mrb[0].mxu0 %v92
    %v232 = vpop.f32.mrb[0].mxu0
    %v233 = vadd.f32 0.0, %v232
    %v234 = vpop.f32.mrb[0].mxu0
    %235 = vmatprep.mubr.f32.mxu0 0.0
    %236 = vmatmul.mubr.f32.gmra.mrb[0].mxu0 %v95
    %v237 = vpop.f32.mrb[0].mxu0
    %v238 = vadd.f32 0.0, %v237
    %v239 = vpop.f32.mrb[0].mxu0
    %240 = vmatprep.mubr.f32.mxu0 0.0
    %241 = vmatmul.mubr.f32.gmra.mrb[0].mxu0 %v98
    %v242 = vpop.f32.mrb[0].mxu0
    %v243 = vadd.f32 0.0, %v242
    %v244 = vpop.f32.mrb[0].mxu0
    %245 = vmatprep.mubr.f32.mxu0 0.0
    %246 = vmatmul.mubr.f32.gmra.mrb[0].mxu0 %v101
    %v247 = vpop.f32.mrb[0].mxu0
    %v248 = vadd.f32 0.0, %v247
    %v249 = vpop.f32.mrb[0].mxu0
    %250 = vdwg.mxu0
    %vm251 = vcmask 15360
    %252 = vst.msk [vmem:[#allocation6] sm:$0xff] %vm251, %v173
    %253 = vst.msk [vmem:[#allocation6 + $0x8] sm:$0xff] %vm251, %v178
    %254 = vst.msk [vmem:[#allocation6 + $0x10] sm:$0xff] %vm251, %v183
    %255 = vst.msk [vmem:[#allocation6 + $0x18] sm:$0xff] %vm251, %v188
    %256 = vst.msk [vmem:[#allocation6 + $0x20] sm:$0xff] %vm251, %v193
    %257 = vst.msk [vmem:[#allocation6 + $0x28] sm:$0xff] %vm251, %v198
    %258 = vst.msk [vmem:[#allocation6 + $0x30] sm:$0xff] %vm251, %v203
    %259 = vst.msk [vmem:[#allocation6 + $0x38] sm:$0xff] %vm251, %v208
    %260 = vst.msk [vmem:[#allocation6 + $0x40] sm:$0xff] %vm251, %v213
    %261 = vst.msk [vmem:[#allocation6 + $0x48] sm:$0xff] %vm251, %v218
    %262 = vst.msk [vmem:[#allocation6 + $0x50] sm:$0xff] %vm251, %v223
    %263 = vst.msk [vmem:[#allocation6 + $0x58] sm:$0xff] %vm251, %v228
    %264 = vst.msk [vmem:[#allocation6 + $0x60] sm:$0xff] %vm251, %v233
    %265 = vst.msk [vmem:[#allocation6 + $0x68] sm:$0xff] %vm251, %v238
    %266 = vst.msk [vmem:[#allocation6 + $0x70] sm:$0xff] %vm251, %v243
    %267 = vst.msk [vmem:[#allocation6 + $0x78] sm:$0xff] %vm251, %v248
    // Predicated region
    $region18: #{tpu_custom_call.1} parent=1 // pred_check
      _
    $region19: #{tpu_custom_call.1} parent=1 // pred_check_branch
      %269 = sbr.rel (0) target = $region21
    $region20: #{tpu_custom_call.1} parent=1 // pred_region
      // Predicated region
      $region22: #{tpu_custom_call.1} parent=20 // pred_check
        _
      $region23: #{tpu_custom_call.1} parent=20 // pred_check_branch
        %271 = sbr.rel (0) target = $region25
      $region24: #{tpu_custom_call.1} parent=20 // pred_region
        // Predicated region
        $region26: #{tpu_custom_call.1} parent=24 // pred_check
          _
        $region27: #{tpu_custom_call.1} parent=24 // pred_check_branch
          %273 = sbr.rel (0) target = $region29
        $region28: #{tpu_custom_call.1} parent=24 // pred_region
          // Predicated region
          $region41: #{tpu_custom_call.1} parent=28 // pred_check
            _
          $region42: #{tpu_custom_call.1} parent=28 // pred_check_branch
            %288 = sbr.rel (0) target = $region44
          $region43: #{tpu_custom_call.1} parent=28 // pred_region
            loop: start=0, step=1, limit=1
            $region45: #{tpu_custom_call.1} parent=43 // loop_pre_header
              _
            $region46: #{tpu_custom_call.1} parent=43 // loop_header
              %s290 = sphi 0, %s294
              %p291 = scmp.ge.s32.totalorder %s290, 1
              %s295 = sphi [#allocation6], [#allocation6]
              %s296 = sphi %s2, %s2
            $region47: #{tpu_custom_call.1} parent=43 // loop_header_branch
              %293 = sbr.rel (%p291) target = $region51
            $region48: #{tpu_custom_call.1} parent=43 // loop_body
              %v297 = vld [vmem:[%s295] sm:$0xff]
              %298 = vst [vmem:[%s296] sm:$0xff] %v297
            $region49: #{tpu_custom_call.1} parent=43 // loop_footer
              %s294 = sadd.s32 1, %s290
            $region50: #{tpu_custom_call.1} parent=43 // loop_footer_branch
              %289 = sbr.rel target = $region46
            $region51: #{tpu_custom_call.1} parent=43 // loop_exit
              _
          $region44: #{tpu_custom_call.1} parent=28 // pred_fallthru
            _
          // Predicated region
          $region52: #{tpu_custom_call.1} parent=28 // pred_check
            _
          $region53: #{tpu_custom_call.1} parent=28 // pred_check_branch
            %300 = sbr.rel target = $region55
          $region54: #{tpu_custom_call.1} parent=28 // pred_region
            _
          $region55: #{tpu_custom_call.1} parent=28 // pred_fallthru
            _
        $region29: #{tpu_custom_call.1} parent=24 // pred_fallthru
          _
        // Predicated region
        $region30: #{tpu_custom_call.1} parent=24 // pred_check
          _
        $region31: #{tpu_custom_call.1} parent=24 // pred_check_branch
          %275 = sbr.rel target = $region33
        $region32: #{tpu_custom_call.1} parent=24 // pred_region
          loop: start=0, step=1, limit=1
          $region34: #{tpu_custom_call.1} parent=32 // loop_pre_header
            _
          $region35: #{tpu_custom_call.1} parent=32 // loop_header
            %s278 = sphi 0, %s282
            %p279 = scmp.ge.s32.totalorder %s278, 1
            %s283 = sphi [#allocation6], [#allocation6]
            %s284 = sphi %s2, %s2
          $region36: #{tpu_custom_call.1} parent=32 // loop_header_branch
            %281 = sbr.rel (%p279) target = $region40
          $region37: #{tpu_custom_call.1} parent=32 // loop_body
            %v285 = vld [vmem:[%s283] sm:$0xff]
            %286 = vst [vmem:[%s284] sm:$0xff] %v285
          $region38: #{tpu_custom_call.1} parent=32 // loop_footer
            %s282 = sadd.s32 1, %s278
          $region39: #{tpu_custom_call.1} parent=32 // loop_footer_branch
            %277 = sbr.rel target = $region35
          $region40: #{tpu_custom_call.1} parent=32 // loop_exit
            _
        $region33: #{tpu_custom_call.1} parent=24 // pred_fallthru
          _
      $region25: #{tpu_custom_call.1} parent=20 // pred_fallthru
        _
      %301 = vnop
    $region21: #{tpu_custom_call.1} parent=1 // pred_fallthru
      _
    // Predicated region
    $region56: #{tpu_custom_call.1} parent=1 // pred_check
      _
    $region57: #{tpu_custom_call.1} parent=1 // pred_check_branch
      %303 = sbr.rel (0) target = $region59
    $region58: #{tpu_custom_call.1} parent=1 // pred_region
      _
    $region59: #{tpu_custom_call.1} parent=1 // pred_fallthru
      _
    %304 = vsyncpa [#allocation3], 1
    %305 = vsyncpa [#allocation5], 1

</llo_original>
